<compile_context>
chip_gen: v7x
topology: tpu7x:2x2x1
jax: 0.10.0
libtpu: 0.0.40
codegen_flags: <defaults>
</compile_context>

<pallas_src>
import math

import jax
import jax.numpy as jnp
from jax.experimental import pallas as pl
from jax.experimental.pallas import tpu as pltpu

LMBDA = 100.0
LOG_2PI = math.log(2.0 * math.pi)


def _round_up(n, m):
    return ((n + m - 1) // m) * m


def _param_offsets(d_theta, d_x):
    """Sublane-aligned row offsets of [w1t | w1x | b1 | w2^T] in the packed param array."""
    off_w1t = 0
    off_w1x = _round_up(d_theta, 8)
    off_b1 = off_w1x + _round_up(d_x, 8)
    off_w2 = off_b1 + 8
    total = off_w2 + 8
    return off_w1t, off_w1x, off_b1, off_w2, total


def pack_params(w1t, w1x, b1, w2):
    """Packs w1t (Dt,H), w1x (Dx,H), b1 (1,H), w2 (H,1) into one aligned (R,H) f32 array."""
    d_theta, hidden = w1t.shape
    d_x = w1x.shape[0]
    off_w1t, off_w1x, off_b1, off_w2, total = _param_offsets(d_theta, d_x)
    packed = jnp.zeros((total, hidden), jnp.float32)
    packed = packed.at[off_w1t:off_w1t + d_theta].set(w1t)
    packed = packed.at[off_w1x:off_w1x + d_x].set(w1x)
    packed = packed.at[off_b1:off_b1 + 1].set(b1)
    packed = packed.at[off_w2:off_w2 + 1].set(w2.T)
    return packed


def bnpe_loss_kernel(theta_ref, x_ref, w_ref, b2_ref, out_ref):
    theta = theta_ref[...]            # (B, Dt)
    x = x_ref[...]                    # (B, Dx)
    w = w_ref[...]                    # (R, H) packed parameters
    b2 = b2_ref[0, 0]                 # scalar output bias (SMEM)

    batch, d_theta = theta.shape
    d_x = x.shape[-1]
    del batch
    off_w1t, off_w1x, off_b1, off_w2, _ = _param_offsets(d_theta, d_x)

    w1t = w[off_w1t:off_w1t + d_theta, :]     # (Dt, H)
    w1x = w[off_w1x:off_w1x + d_x, :]         # (Dx, H)
    b1 = w[off_b1:off_b1 + 1, :]              # (1, H)
    w2_row = w[off_w2:off_w2 + 1, :]          # (1, H)

    # ---- First layer.  The x-branch is computed once and shared by both estimator
    # passes.  The theta-branch is a single MXU push: since a row-wise matmul commutes
    # with a row permutation, theta_prime's activations are obtained by rolling the
    # RESULT, so torch.roll(theta, 1, 0) is never materialized.
    tw = jnp.dot(theta, w1t, preferred_element_type=jnp.float32)        # (B, H)
    xw = jnp.dot(x, w1x, preferred_element_type=jnp.float32) + b1       # (B, H) shared

    # In-kernel batch roll on the (otherwise idle) XLU: tw_p[i] = tw[(i-1) % B]
    #   == (torch.roll(theta, 1, 0) @ w1t)[i]   (bit-identical, rows are independent).
    tw_p = pltpu.roll(tw, shift=1, axis=0)                              # (B, H)

    h = jnp.tanh(tw + xw)           # (B, H)  pass 1: theta
    h_p = jnp.tanh(tw_p + xw)       # (B, H)  pass 2: theta_prime (implicit)

    # ---- Second layer as VPU multiply + lane reduction (avoids an N=1 MXU matvec).
    log_p = jnp.sum(h * w2_row, axis=-1, keepdims=True) + b2            # (B, 1)
    log_p_prime = jnp.sum(h_p * w2_row, axis=-1, keepdims=True) + b2    # (B, 1)

    # ---- Standard-Normal prior log-probs.  prior(theta_prime) is just the rolled
    # prior vector (row-wise function), so the theta^2 reduction is done only once.
    const = 0.5 * d_theta * LOG_2PI
    prior = -0.5 * jnp.sum(theta * theta, axis=-1, keepdims=True) - const   # (B, 1)
    prior_p = pltpu.roll(prior, shift=1, axis=0)                            # (B, 1)

    # ---- Loss.  Overflow-safe sigmoid via tanh (EUP slot, no VPU divide).
    def sigmoid(z):
        return 0.5 * (jnp.tanh(0.5 * z) + 1.0)

    l0 = -jnp.mean(log_p)
    s = sigmoid(log_p - prior) + sigmoid(log_p_prime - prior_p) - 1.0
    lb = jnp.square(jnp.mean(s))
    out_ref[0, 0] = l0 + LMBDA * lb   # scalar store to SMEM output


def bnpe_loss(theta, x, params):
    """Pallas-backed BNPELoss.forward. Returns a scalar float32."""
    w1t, w1x, b1, w2, b2 = params
    w_packed = pack_params(w1t, w1x, b1, w2)
    b2_smem = jnp.reshape(b2.astype(jnp.float32), (1, 1))

    vmem = pl.BlockSpec(memory_space=pltpu.MemorySpace.VMEM)
    smem = pl.BlockSpec(memory_space=pltpu.MemorySpace.SMEM)

    # NOTE: the whole batch lives in one VMEM block (B is tiny here).  For large B, add a
    # batch grid: sublane-tiled theta/x BlockSpecs; an "arbitrary" reduction axis that
    # accumulates RAW sums (sum_log_p, sum_s, valid-row count) in scratch with pl.when
    # init on step 0 and divide/square/combine only on the last step (mean(s)^2 is
    # nonlinear -- per-tile means must not be averaged); a 1-row cross-tile halo for the
    # roll; masking of padded rows out of both sums; a leading "parallel" axis so v7x's
    # two TensorCores each produce partial sums combined in the wrapper; tiles sized
    # against v7x's 64 MiB VMEM (32 MiB default scoped -- set vmem_limit_bytes); and on
    # v5e stream [theta|x] packed rows in bf16 (16 MiB default scoped, ~0.8 TB/s HBM).
    out = pl.pallas_call(
        bnpe_loss_kernel,
        out_shape=jax.ShapeDtypeStruct((1, 1), jnp.float32),
        in_specs=[vmem, vmem, vmem, smem],
        out_specs=smem,   # scalar loss -> SMEM (no padded VMEM output tile / masked vst)
    )(theta, x, w_packed, b2_smem)
    return out[0, 0]


def bnpe_loss_reference(theta, x, params):
    """Pure-JAX reference for correctness checking (mirrors the PyTorch module)."""
    w1t, w1x, b1, w2, b2 = params
    theta_prime = jnp.roll(theta, 1, axis=0)

    def est(t):
        h = jnp.tanh(t @ w1t + x @ w1x + b1)
        return h @ w2 + b2

    def prior_lp(t):
        return (-0.5 * jnp.sum(t * t, axis=-1, keepdims=True)
                - 0.5 * t.shape[-1] * LOG_2PI)

    log_p = est(theta)
    log_p_prime = est(theta_prime)
    l0 = -jnp.mean(log_p)
    s = (jax.nn.sigmoid(log_p - prior_lp(theta))
         + jax.nn.sigmoid(log_p_prime - prior_lp(theta_prime)) - 1.0)
    lb = jnp.square(jnp.mean(s))
    return l0 + LMBDA * lb


if __name__ == "__main__":
    # HIDDEN is a multiple of 128 so hidden-layer vregs are lane-dense.
    B, D_THETA, D_X, HIDDEN = 8, 4, 16, 128

    key = jax.random.PRNGKey(0)
    k_th, k_x, k_w1t, k_w1x, k_b1, k_w2, k_b2 = jax.random.split(key, 7)

    theta = jax.random.normal(k_th, (B, D_THETA), dtype=jnp.float32)
    x = jax.random.normal(k_x, (B, D_X), dtype=jnp.float32)

    # Deterministic synthetic estimator parameters (single-hidden-layer MLP).
    w1t = 0.1 * jax.random.normal(k_w1t, (D_THETA, HIDDEN), dtype=jnp.float32)
    w1x = 0.1 * jax.random.normal(k_w1x, (D_X, HIDDEN), dtype=jnp.float32)
    b1 = 0.1 * jax.random.normal(k_b1, (1, HIDDEN), dtype=jnp.float32)
    w2 = 0.1 * jax.random.normal(k_w2, (HIDDEN, 1), dtype=jnp.float32)
    b2 = 0.1 * jax.random.normal(k_b2, (1, 1), dtype=jnp.float32)
    params = (w1t, w1x, b1, w2, b2)

    loss = jax.jit(bnpe_loss)(theta, x, params)
    loss = jax.block_until_ready(loss)

    ref = bnpe_loss_reference(theta, x, params)
    # Tolerance: the first-layer matmuls run at default MXU precision (bf16 passes) in
    # both the kernel and the XLA reference but with different rounding order; the
    # second layer / prior / roll are exact f32 in the kernel.  2e-4 bounds the bf16
    # pass mismatch comfortably while still validating the math.
    assert jnp.allclose(loss, ref, rtol=2e-4, atol=2e-4), (loss, ref)

    print("KERNEL_OK")
</pallas_src>

<mosaic_0001>
module attributes {stable_mosaic.version = 11 : i64} {
  func.func @bnpe_loss_kernel(%arg0: memref<8x4xf32, #tpu.memory_space<vmem>>, %arg1: memref<8x16xf32, #tpu.memory_space<vmem>>, %arg2: memref<40x128xf32, #tpu.memory_space<vmem>>, %arg3: memref<1x1xf32, #tpu.memory_space<smem>>, %arg4: memref<1x1xf32, #tpu.memory_space<smem>>) attributes {dimension_semantics = [], scalar_prefetch = 0 : i64, scratch_operands = 0 : i64, tpu.core_type = #tpu.core_type<tc>} {
    %c0 = arith.constant 0 : index
    %c0_0 = arith.constant 0 : index
    %0 = vector.load %arg0[%c0, %c0_0] : memref<8x4xf32, #tpu.memory_space<vmem>>, vector<8x4xf32>
    %c0_1 = arith.constant 0 : index
    %c0_2 = arith.constant 0 : index
    %1 = vector.load %arg1[%c0_1, %c0_2] : memref<8x16xf32, #tpu.memory_space<vmem>>, vector<8x16xf32>
    %c0_3 = arith.constant 0 : index
    %c0_4 = arith.constant 0 : index
    %2 = vector.load %arg2[%c0_3, %c0_4] : memref<40x128xf32, #tpu.memory_space<vmem>>, vector<40x128xf32>
    %c0_5 = arith.constant 0 : index
    %c0_6 = arith.constant 0 : index
    %3 = memref.load %arg3[%c0_5, %c0_6] : memref<1x1xf32, #tpu.memory_space<smem>>
    %4 = vector.extract_strided_slice %2 {offsets = [0, 0], sizes = [4, 128], strides = [1, 1]} : vector<40x128xf32> to vector<4x128xf32>
    %5 = vector.extract_strided_slice %2 {offsets = [8, 0], sizes = [16, 128], strides = [1, 1]} : vector<40x128xf32> to vector<16x128xf32>
    %6 = vector.extract_strided_slice %2 {offsets = [24, 0], sizes = [1, 128], strides = [1, 1]} : vector<40x128xf32> to vector<1x128xf32>
    %7 = vector.extract_strided_slice %2 {offsets = [32, 0], sizes = [1, 128], strides = [1, 1]} : vector<40x128xf32> to vector<1x128xf32>
    %cst = arith.constant dense<0.000000e+00> : vector<8x128xf32>
    %8 = tpu.matmul %0, %4, %cst {dimension_numbers = #tpu.dot_dimension_numbers<[1], [0], [0], [1], [0, 0, 1, 1], [], []>} : vector<8x4xf32>, vector<4x128xf32>, vector<8x128xf32> -> vector<8x128xf32>
    %cst_7 = arith.constant dense<0.000000e+00> : vector<8x128xf32>
    %9 = tpu.matmul %1, %5, %cst_7 {dimension_numbers = #tpu.dot_dimension_numbers<[1], [0], [0], [1], [0, 0, 1, 1], [], []>} : vector<8x16xf32>, vector<16x128xf32>, vector<8x128xf32> -> vector<8x128xf32>
    %10 = vector.broadcast %6 : vector<1x128xf32> to vector<8x128xf32>
    %11 = arith.addf %9, %10 : vector<8x128xf32>
    %c1_i32 = arith.constant 1 : i32
    %12 = tpu.dynamic_rotate %8 by %c1_i32 dim 0 : vector<8x128xf32>, i32 -> vector<8x128xf32>
    %13 = arith.addf %8, %11 : vector<8x128xf32>
    %14 = math.tanh %13 : vector<8x128xf32>
    %15 = arith.addf %12, %11 : vector<8x128xf32>
    %16 = math.tanh %15 : vector<8x128xf32>
    %17 = vector.broadcast %7 : vector<1x128xf32> to vector<8x128xf32>
    %18 = arith.mulf %14, %17 : vector<8x128xf32>
    %cst_8 = arith.constant dense<0.000000e+00> : vector<8xf32>
    %19 = vector.multi_reduction <add>, %18, %cst_8 [1] : vector<8x128xf32> to vector<8xf32>
    %20 = vector.shape_cast %19 : vector<8xf32> to vector<8x1xf32>
    %21 = vector.broadcast %3 : f32 to vector<8x1xf32>
    %22 = arith.addf %20, %21 : vector<8x1xf32>
    %23 = vector.broadcast %7 : vector<1x128xf32> to vector<8x128xf32>
    %24 = arith.mulf %16, %23 : vector<8x128xf32>
    %cst_9 = arith.constant dense<0.000000e+00> : vector<8xf32>
    %25 = vector.multi_reduction <add>, %24, %cst_9 [1] : vector<8x128xf32> to vector<8xf32>
    %26 = vector.shape_cast %25 : vector<8xf32> to vector<8x1xf32>
    %27 = vector.broadcast %3 : f32 to vector<8x1xf32>
    %28 = arith.addf %26, %27 : vector<8x1xf32>
    %29 = arith.mulf %0, %0 : vector<8x4xf32>
    %cst_10 = arith.constant dense<0.000000e+00> : vector<8xf32>
    %30 = vector.multi_reduction <add>, %29, %cst_10 [1] : vector<8x4xf32> to vector<8xf32>
    %31 = vector.shape_cast %30 : vector<8xf32> to vector<8x1xf32>
    %cst_11 = arith.constant -5.000000e-01 : f32
    %32 = vector.broadcast %cst_11 : f32 to vector<8x1xf32>
    %33 = arith.mulf %32, %31 : vector<8x1xf32>
    %cst_12 = arith.constant 3.67575407 : f32
    %34 = vector.broadcast %cst_12 : f32 to vector<8x1xf32>
    %35 = arith.subf %33, %34 : vector<8x1xf32>
    %c1_i32_13 = arith.constant 1 : i32
    %36 = tpu.dynamic_rotate %35 by %c1_i32_13 dim 0 : vector<8x1xf32>, i32 -> vector<8x1xf32>
    %37 = vector.shape_cast %22 : vector<8x1xf32> to vector<1x8x1xf32>
    %cst_14 = arith.constant dense<0.000000e+00> : vector<1xf32>
    %38 = vector.multi_reduction <add>, %37, %cst_14 [1, 2] : vector<1x8x1xf32> to vector<1xf32>
    %39 = vector.shape_cast %38 : vector<1xf32> to vector<1x1x1xf32>
    %40 = vector.extract %39[0, 0, 0] : f32 from vector<1x1x1xf32>
    %cst_15 = arith.constant 8.000000e+00 : f32
    %41 = arith.divf %40, %cst_15 : f32
    %cst_16 = arith.constant 0.000000e+00 : f32
    %42 = arith.subf %cst_16, %41 : f32
    %43 = arith.subf %22, %35 : vector<8x1xf32>
    %cst_17 = arith.constant 5.000000e-01 : f32
    %44 = vector.broadcast %cst_17 : f32 to vector<8x1xf32>
    %45 = arith.mulf %44, %43 : vector<8x1xf32>
    %46 = math.tanh %45 : vector<8x1xf32>
    %cst_18 = arith.constant 1.000000e+00 : f32
    %47 = vector.broadcast %cst_18 : f32 to vector<8x1xf32>
    %48 = arith.addf %46, %47 : vector<8x1xf32>
    %cst_19 = arith.constant 5.000000e-01 : f32
    %49 = vector.broadcast %cst_19 : f32 to vector<8x1xf32>
    %50 = arith.mulf %49, %48 : vector<8x1xf32>
    %51 = arith.subf %28, %36 : vector<8x1xf32>
    %cst_20 = arith.constant 5.000000e-01 : f32
    %52 = vector.broadcast %cst_20 : f32 to vector<8x1xf32>
    %53 = arith.mulf %52, %51 : vector<8x1xf32>
    %54 = math.tanh %53 : vector<8x1xf32>
    %cst_21 = arith.constant 1.000000e+00 : f32
    %55 = vector.broadcast %cst_21 : f32 to vector<8x1xf32>
    %56 = arith.addf %54, %55 : vector<8x1xf32>
    %cst_22 = arith.constant 5.000000e-01 : f32
    %57 = vector.broadcast %cst_22 : f32 to vector<8x1xf32>
    %58 = arith.mulf %57, %56 : vector<8x1xf32>
    %59 = arith.addf %50, %58 : vector<8x1xf32>
    %cst_23 = arith.constant 1.000000e+00 : f32
    %60 = vector.broadcast %cst_23 : f32 to vector<8x1xf32>
    %61 = arith.subf %59, %60 : vector<8x1xf32>
    %62 = vector.shape_cast %61 : vector<8x1xf32> to vector<1x8x1xf32>
    %cst_24 = arith.constant dense<0.000000e+00> : vector<1xf32>
    %63 = vector.multi_reduction <add>, %62, %cst_24 [1, 2] : vector<1x8x1xf32> to vector<1xf32>
    %64 = vector.shape_cast %63 : vector<1xf32> to vector<1x1x1xf32>
    %65 = vector.extract %64[0, 0, 0] : f32 from vector<1x1x1xf32>
    %cst_25 = arith.constant 8.000000e+00 : f32
    %66 = arith.divf %65, %cst_25 : f32
    %67 = arith.mulf %66, %66 : f32
    %cst_26 = arith.constant 1.000000e+02 : f32
    %68 = arith.mulf %cst_26, %67 : f32
    %69 = arith.addf %42, %68 : f32
    %c0_27 = arith.constant 0 : index
    %c0_28 = arith.constant 0 : index
    %70 = memref.load %arg4[%c0_27, %c0_28] : memref<1x1xf32, #tpu.memory_space<smem>>
    memref.store %69, %arg4[%c0_27, %c0_28] : memref<1x1xf32, #tpu.memory_space<smem>>
    return
  }
}

</mosaic_0001>

<llo_original>
// kernel: bnpe_loss.1
$region0: #{bnpe_loss.1}
  #allocation0 [shape = 'u32[]', space=smem, size = 0x4, offset = 0x4, fixed_abs, tag = 'smem constant byte address 0x4 - core index']
  #allocation1 [shape = 'u32[144,128]{1,0:T(1,128)}', space=vmem, size = 0x12000, scoped, tag = 'internal scratch']
  #allocation2 [shape = 'f32[1,1]{1,0:T(1,128)S(6)}', space=smem, size = 0x200, scoped, tag = 'scoped memory for bnpe_loss.1']
  %s0 = inlined_call_operand.vmem [shape: f32[8,4], index: 0, kind: input, shape index: {}]
  %s1 = inlined_call_operand.vmem [shape: f32[8,16], index: 1, kind: input, shape index: {}]
  %s2 = inlined_call_operand.vmem [shape: f32[40,128], index: 2, kind: input, shape index: {}]
  %s3 = inlined_call_operand.<no memory space> [shape: f32[1,1], index: 3, kind: input, shape index: {}]
  %s4 = inlined_call_operand.hbm [shape: f32[1,1], index: 4, kind: output, shape index: {}]
  %s5 = sld [smem:[#allocation0]]
  $region26: #{bnpe_loss.1} parent=0
    _
  %s7 = ssub.s32 1, %s5
  %s8 = scalar_select 0, %s7, %s5
  %9 = sst [smem:[#allocation2]] %s3
  $region1: #{bnpe_loss.1} parent=0
    #allocation3 [shape = 'u8[512]{0}', space=smem, size = 0x200, scoped, tag = 'output window, operand 0, single buffered']
    #allocation4 [shape = 's32[1]{0}', space=sflag, size = 0x4, scoped, tag = 'scoped memory for bnpe_loss.1']
    %10 = vsyncpa [#allocation4], 0
    // Predicated region
    $region2: #{bnpe_loss.1} parent=1 // pred_check
      _
    $region3: #{bnpe_loss.1} parent=1 // pred_check_branch
      %12 = sbr.rel (0) target = $region5
    $region4: #{bnpe_loss.1} parent=1 // pred_region
      _
    $region5: #{bnpe_loss.1} parent=1 // pred_fallthru
      _
    // Predicated region
    $region6: #{bnpe_loss.1} parent=1 // pred_check
      _
    $region7: #{bnpe_loss.1} parent=1 // pred_check_branch
      %14 = sbr.rel (0) target = $region9
    $region8: #{bnpe_loss.1} parent=1 // pred_region
      _
    $region9: #{bnpe_loss.1} parent=1 // pred_fallthru
      _
    // Predicated region
    $region10: #{bnpe_loss.1} parent=1 // pred_check
      _
    $region11: #{bnpe_loss.1} parent=1 // pred_check_branch
      %16 = sbr.rel (0) target = $region13
    $region12: #{bnpe_loss.1} parent=1 // pred_region
      _
    $region13: #{bnpe_loss.1} parent=1 // pred_fallthru
      _
    // Predicated region
    $region14: #{bnpe_loss.1} parent=1 // pred_check
      _
    $region15: #{bnpe_loss.1} parent=1 // pred_check_branch
      %18 = sbr.rel (0) target = $region17
    $region16: #{bnpe_loss.1} parent=1 // pred_region
      _
    $region17: #{bnpe_loss.1} parent=1 // pred_fallthru
      _
    %v19 = vld [vmem:[%s0] sm:$0xff]
    %v20 = vld [vmem:[%s1] sm:$0xff]
    %v21 = vld [vmem:[%s2] sm:$0xff]
    %v22 = vld [vmem:[%s2 + $0x8] sm:$0xff]
    %v23 = vld [vmem:[%s2 + $0x10] sm:$0xff]
    %v24 = vld [vmem:[%s2 + $0x18] sm:$0xff]
    %v25 = vld [vmem:[%s2 + $0x20] sm:$0xff]
    %s26 = sld [smem:[#allocation2]]
    %vm27 = vcmask 31744
    %v29 = vsel %vm27, %v19, 0
    %vm31 = vcmask 1043456
    %v33 = vsel %vm31, %v21, 0
    %35 = vmatprep.subr.mxu0 0.0
    %36 = vmatpush1.msra.mxu0 %v33
    %37 = vmatprep.subr.mxu0 0.0
    %38 = vmatpush1.msra.mxu0 0.0
    %39 = vmatprep.subr.mxu0 0.0
    %40 = vmatpush1.msra.mxu0 0.0
    %41 = vmatprep.subr.mxu0 0.0
    %42 = vmatpush1.msra.mxu0 0.0
    %43 = vmatprep.subr.mxu0 0.0
    %44 = vmatpush1.msra.mxu0 0.0
    %45 = vmatprep.subr.mxu0 0.0
    %46 = vmatpush1.msra.mxu0 0.0
    %47 = vmatprep.subr.mxu0 0.0
    %48 = vmatpush1.msra.mxu0 0.0
    %49 = vmatprep.subr.mxu0 0.0
    %50 = vmatpush1.msra.mxu0 0.0
    %51 = vmatprep.subr.mxu0 0.0
    %52 = vmatpush1.msra.mxu0 0.0
    %53 = vmatprep.subr.mxu0 0.0
    %54 = vmatpush1.msra.mxu0 0.0
    %55 = vmatprep.subr.mxu0 0.0
    %56 = vmatpush1.msra.mxu0 0.0
    %57 = vmatprep.subr.mxu0 0.0
    %58 = vmatpush1.msra.mxu0 0.0
    %59 = vmatprep.subr.mxu0 0.0
    %60 = vmatpush1.msra.mxu0 0.0
    %61 = vmatprep.subr.mxu0 0.0
    %62 = vmatpush1.msra.mxu0 0.0
    %63 = vmatprep.subr.mxu0 0.0
    %64 = vmatpush1.msra.mxu0 0.0
    %65 = vmatprep.subr.mxu0 0.0
    %66 = vmatpush1.msra.mxu0 0.0
    %67 = vmatprep.subr.mxu0 0.0
    %68 = vmatpush1.msra.mxu0 0.0
    %69 = vmatprep.subr.mxu0 0.0
    %70 = vmatpush1.msra.mxu0 0.0
    %71 = vmatprep.subr.mxu0 0.0
    %72 = vmatpush1.msra.mxu0 0.0
    %73 = vmatprep.subr.mxu0 0.0
    %74 = vmatpush1.msra.mxu0 0.0
    %75 = vmatprep.subr.mxu0 0.0
    %76 = vmatpush1.msra.mxu0 0.0
    %77 = vmatprep.subr.mxu0 0.0
    %78 = vmatpush1.msra.mxu0 0.0
    %79 = vmatprep.subr.mxu0 0.0
    %80 = vmatpush1.msra.mxu0 0.0
    %81 = vmatprep.subr.mxu0 0.0
    %82 = vmatpush1.msra.mxu0 0.0
    %83 = vmatprep.subr.mxu0 0.0
    %84 = vmatpush1.msra.mxu0 0.0
    %85 = vmatprep.subr.mxu0 0.0
    %86 = vmatpush1.msra.mxu0 0.0
    %87 = vmatprep.subr.mxu0 0.0
    %88 = vmatpush1.msra.mxu0 0.0
    %89 = vmatprep.subr.mxu0 0.0
    %90 = vmatpush1.msra.mxu0 0.0
    %91 = vmatprep.subr.mxu0 0.0
    %92 = vmatpush1.msra.mxu0 0.0
    %93 = vmatprep.subr.mxu0 0.0
    %94 = vmatpush1.msra.mxu0 0.0
    %95 = vmatprep.subr.mxu0 0.0
    %96 = vmatpush1.msra.mxu0 0.0
    %97 = vmatprep.subr.mxu0 0.0
    %98 = vmatpush1.msra.mxu0 0.0
    %99 = vmatprep.mubr.f32.mxu0 0.0
    %100 = vmatmul.mubr.f32.gmra.mrb[0].mxu0 %v29
    %v101 = vpop.f32.mrb[0].mxu0
    %v102 = vadd.f32 0.0, %v101
    %v103 = vpop.f32.mrb[0].mxu0
    %104 = vdwg.mxu0
    %v105 = vlaneseq
    %v106 = vshrl.u32 %v105, 7
    %v107 = vsub.s32 0, %v106
    %v108 = vrot.slane %v24, %v107
    %vm109 = vcmask 130048
    %v111 = vsel %vm109, %v20, 0
    %113 = vmatprep.subr.mxu0 0.0
    %114 = vmatpush1.msra.mxu0 %v22
    %115 = vmatprep.subr.mxu0 0.0
    %116 = vmatpush1.msra.mxu0 %v23
    %117 = vmatprep.subr.mxu0 0.0
    %118 = vmatpush1.msra.mxu0 0.0
    %119 = vmatprep.subr.mxu0 0.0
    %120 = vmatpush1.msra.mxu0 0.0
    %121 = vmatprep.subr.mxu0 0.0
    %122 = vmatpush1.msra.mxu0 0.0
    %123 = vmatprep.subr.mxu0 0.0
    %124 = vmatpush1.msra.mxu0 0.0
    %125 = vmatprep.subr.mxu0 0.0
    %126 = vmatpush1.msra.mxu0 0.0
    %127 = vmatprep.subr.mxu0 0.0
    %128 = vmatpush1.msra.mxu0 0.0
    %129 = vmatprep.subr.mxu0 0.0
    %130 = vmatpush1.msra.mxu0 0.0
    %131 = vmatprep.subr.mxu0 0.0
    %132 = vmatpush1.msra.mxu0 0.0
    %133 = vmatprep.subr.mxu0 0.0
    %134 = vmatpush1.msra.mxu0 0.0
    %135 = vmatprep.subr.mxu0 0.0
    %136 = vmatpush1.msra.mxu0 0.0
    %137 = vmatprep.subr.mxu0 0.0
    %138 = vmatpush1.msra.mxu0 0.0
    %139 = vmatprep.subr.mxu0 0.0
    %140 = vmatpush1.msra.mxu0 0.0
    %141 = vmatprep.subr.mxu0 0.0
    %142 = vmatpush1.msra.mxu0 0.0
    %143 = vmatprep.subr.mxu0 0.0
    %144 = vmatpush1.msra.mxu0 0.0
    %145 = vmatprep.subr.mxu0 0.0
    %146 = vmatpush1.msra.mxu0 0.0
    %147 = vmatprep.subr.mxu0 0.0
    %148 = vmatpush1.msra.mxu0 0.0
    %149 = vmatprep.subr.mxu0 0.0
    %150 = vmatpush1.msra.mxu0 0.0
    %151 = vmatprep.subr.mxu0 0.0
    %152 = vmatpush1.msra.mxu0 0.0
    %153 = vmatprep.subr.mxu0 0.0
    %154 = vmatpush1.msra.mxu0 0.0
    %155 = vmatprep.subr.mxu0 0.0
    %156 = vmatpush1.msra.mxu0 0.0
    %157 = vmatprep.subr.mxu0 0.0
    %158 = vmatpush1.msra.mxu0 0.0
    %159 = vmatprep.subr.mxu0 0.0
    %160 = vmatpush1.msra.mxu0 0.0
    %161 = vmatprep.subr.mxu0 0.0
    %162 = vmatpush1.msra.mxu0 0.0
    %163 = vmatprep.subr.mxu0 0.0
    %164 = vmatpush1.msra.mxu0 0.0
    %165 = vmatprep.subr.mxu0 0.0
    %166 = vmatpush1.msra.mxu0 0.0
    %167 = vmatprep.subr.mxu0 0.0
    %168 = vmatpush1.msra.mxu0 0.0
    %169 = vmatprep.subr.mxu0 0.0
    %170 = vmatpush1.msra.mxu0 0.0
    %171 = vmatprep.subr.mxu0 0.0
    %172 = vmatpush1.msra.mxu0 0.0
    %173 = vmatprep.subr.mxu0 0.0
    %174 = vmatpush1.msra.mxu0 0.0
    %175 = vmatprep.subr.mxu0 0.0
    %176 = vmatpush1.msra.mxu0 0.0
    %177 = vmatprep.mubr.f32.mxu0 0.0
    %178 = vmatmul.mubr.f32.gmra.mrb[0].mxu0 %v111
    %v179 = vpop.f32.mrb[0].mxu0
    %v180 = vadd.f32 %v108, %v179
    %v181 = vpop.f32.mrb[0].mxu0
    %182 = vdwg.mxu0
    %v183 = vrot.slane %v102, 7
    %v184 = vadd.f32 %v102, %v180
    %v185 = vtanh.pop %v184
    %v186 = vadd.f32 %v183, %v180
    %v187 = vtanh.pop %v186
    %v188 = vlaneseq
    %v189 = vshrl.u32 %v188, 7
    %v190 = vsub.s32 0, %v189
    %v191 = vrot.slane %v25, %v190
    %v192 = vmul.f32 %v185, %v191
    %193 = vadd.xlane.f32.xlu0 %v192
    %v194 = vpop.xlane.xlu0 %193
    %v195 = vstv %s26
    %v196 = vadd.f32 %v194, %v195
    %v197 = vmul.f32 %v187, %v191
    %198 = vadd.xlane.f32.xlu0 %v197
    %v199 = vpop.xlane.xlu0 %198
    %v200 = vadd.f32 %v199, %v195
    %v201 = vmul.f32 %v19, %v19
    %v202 = vsel %vm27, %v201, 0.0
    %203 = vadd.xlane.f32.xlu0 %v202
    %v204 = vpop.xlane.xlu0 %203
    %v205 = vmul.f32 %v204, -0.5
    %v206 = vsub.f32 %v205, 3.675754
    %v207 = vrot.slane %v206, 7
    %vm208 = vcmask 7168
    %v209 = vsel %vm208, %v196, 0.0
    %210 = vadd.xlane.f32.xlu0 %v209
    %v211 = vpop.xlane.xlu0 %210
    %v212 = vrot.slane %v211, 4
    %v213 = vadd.f32 %v211, %v212
    %v214 = vrot.slane %v213, 2
    %v215 = vadd.f32 %v213, %v214
    %v216 = vrot.slane %v215, 1
    %v217 = vadd.f32 %v215, %v216
    %s218 = vtos %v217
    %v219 = vrcp.pop 8.0
    %s220 = vtos %v219
    %s221 = smul.f32 %s218, %s220
    %s222 = ssub.f32 0.0, %s221
    %v223 = vsub.f32 %v196, %v206
    %v224 = vmul.f32 %v223, 0.5
    %v225 = vtanh.pop %v224
    %v226 = vadd.f32 %v225, 1.0
    %v227 = vmul.f32 %v226, 0.5
    %v228 = vsub.f32 %v200, %v207
    %v229 = vmul.f32 %v228, 0.5
    %v230 = vtanh.pop %v229
    %v231 = vadd.f32 %v230, 1.0
    %v232 = vmul.f32 %v231, 0.5
    %v233 = vadd.f32 %v227, %v232
    %v234 = vsub.f32 %v233, 1.0
    %v235 = vsel %vm208, %v234, 0.0
    %236 = vadd.xlane.f32.xlu0 %v235
    %v237 = vpop.xlane.xlu0 %236
    %v238 = vrot.slane %v237, 4
    %v239 = vadd.f32 %v237, %v238
    %v240 = vrot.slane %v239, 2
    %v241 = vadd.f32 %v239, %v240
    %v242 = vrot.slane %v241, 1
    %v243 = vadd.f32 %v241, %v242
    %s244 = vtos %v243
    %v245 = vrcp.pop 8.0
    %s246 = vtos %v245
    %s247 = smul.f32 %s244, %s246
    %s248 = smul.f32 %s247, %s247
    %s249 = smul.f32 %s248, 100.0
    %s250 = sadd.f32 %s222, %s249
    %s251 = scalar_lea.smem [#allocation3], 0
    %252 = sst [smem:[%s251]] %s250
    // Predicated region
    $region18: #{bnpe_loss.1} parent=1 // pred_check
      _
    $region19: #{bnpe_loss.1} parent=1 // pred_check_branch
      %254 = sbr.rel (0) target = $region21
    $region20: #{bnpe_loss.1} parent=1 // pred_region
      %s256 = ssub.s32 16, 16
      %257 = vsyncadd [#allocation4], %s256
      %260 = dma.smem_to_hbm [#allocation3], 16, %s4, [#allocation4]
    $region21: #{bnpe_loss.1} parent=1 // pred_fallthru
      _
    // Predicated region
    $region22: #{bnpe_loss.1} parent=1 // pred_check
      _
    $region23: #{bnpe_loss.1} parent=1 // pred_check_branch
      %262 = sbr.rel (0) target = $region25
    $region24: #{bnpe_loss.1} parent=1 // pred_region
      %263 = dma.done [#allocation4], 16
    $region25: #{bnpe_loss.1} parent=1 // pred_fallthru
      _
    %264 = sfence
    %265 = vsyncpa [#allocation4], 1

</llo_original>
